<compile_context>
chip_gen: v6e
topology: v6e:2x2x1
jax: 0.10.0
libtpu: 0.0.40
codegen_flags: <defaults>
</compile_context>

<pallas_src>
import functools

import jax
import jax.numpy as jnp
from jax.experimental import pallas as pl
from jax.experimental.pallas import tpu as pltpu


def _round_up(x, m):
    return ((x + m - 1) // m) * m


def _cdiv(a, b):
    return -(-a // b)


def _vmem_cap_bytes():
    # Per-core VMEM: 128 MiB on v5e/v6e, 64 MiB on v7x.  Leave ~8 MiB headroom for
    # compiler-internal scratch; fall back to the v7x-safe value if the query fails.
    cap = 64 * 1024 * 1024
    try:
        info = pltpu.get_tpu_info()
        cap = int(getattr(info, "vmem_capacity_bytes", cap))
    except Exception:
        pass
    return max(cap - (8 << 20), 32 << 20)


def _choose_tile_n(n):
    """Row-tile size: balanced tiles, <=512 rows, >=2 tiles when n > 256 (v7x cores)."""
    if n <= 256:
        return n                      # single tile; block row-dim == full dim is legal
    num_tiles = max(2, _cdiv(n, 512))
    return _round_up(_cdiv(n, num_tiles), 16)   # 16 sublanes: valid for bf16 and f32


# ----------------------------------------------------------------------------------
# Kernel
# ----------------------------------------------------------------------------------
def feature_kernel(x_ref, w_fc_ref, b_ref, w_cls_ref, b_cls_ref, feat_ref, cls_ref):
    # x: (tile_n, K) ; w_fc: (K, D) ; b: (1, D) ; w_cls: (D, C) ; b_cls: (1, C)
    h = jnp.dot(x_ref[...], w_fc_ref[...], preferred_element_type=jnp.float32)
    # cls path starts straight from h (bias already folded into b_cls), so the second
    # MXU pass is not gated on the VPU bias add.
    cls = jnp.dot(h.astype(w_cls_ref.dtype), w_cls_ref[...],
                  preferred_element_type=jnp.float32) + b_cls_ref[...]
    cls_ref[...] = cls.astype(cls_ref.dtype)
    # feat path: f32 bias add + store use otherwise-idle VPU / store slots.
    feat_ref[...] = (h + b_ref[...]).astype(feat_ref.dtype)


# ----------------------------------------------------------------------------------
# One-time parameter preparation (hoisted out of the per-call forward)
# ----------------------------------------------------------------------------------
def prepare_params(w_fc, b_fc, bn_gamma, bn_beta, bn_mean, bn_var, w_cls, *,
                   eps=1e-5, compute_dtype=jnp.bfloat16, lane_multiple=128):
    """Fold BatchNorm1d (eval) into fc, transpose, lane-pad, and cast — once.

    lane_multiple=128 is MXU-native everywhere; 256 recovers a little extra MXU
    utilization on v6e/v7x (256x256 tiles) at the cost of larger resident weights.
    """
    low_dim, input_dim = w_fc.shape
    class_num = w_cls.shape[0]

    f32 = jnp.float32
    inv_std = 1.0 / jnp.sqrt(bn_var.astype(f32) + eps)
    scale = bn_gamma.astype(f32) * inv_std                    # (low_dim,)
    shift = bn_beta.astype(f32) - bn_mean.astype(f32) * scale # (low_dim,)
    w_fc_eff = (w_fc.astype(f32) * scale[:, None]).T          # (K, low_dim), BN folded
    b_eff = b_fc.astype(f32) * scale + shift                  # (low_dim,)
    w_cls_t = w_cls.astype(f32).T                             # (low_dim, class_num)
    b_cls = b_eff @ w_cls_t                                   # (class_num,) bias fold

    D = _round_up(low_dim, lane_multiple)
    C = _round_up(class_num, lane_multiple)

    w_fc_p = jnp.zeros((input_dim, D), f32).at[:, :low_dim].set(w_fc_eff)
    b_p = jnp.zeros((1, D), f32).at[0, :low_dim].set(b_eff)
    w_cls_p = jnp.zeros((D, C), f32).at[:low_dim, :class_num].set(w_cls_t)
    b_cls_p = jnp.zeros((1, C), f32).at[0, :class_num].set(b_cls)

    return {
        "w_fc": w_fc_p.astype(compute_dtype),   # (K, D)  matmul operand dtype
        "b": b_p,                               # (1, D)  f32
        "w_cls": w_cls_p.astype(compute_dtype), # (D, C)
        "b_cls": b_cls_p,                       # (1, C)  f32
        "input_dim": input_dim,
        "low_dim": low_dim,
        "class_num": class_num,
    }


# ----------------------------------------------------------------------------------
# Per-call forward
# ----------------------------------------------------------------------------------
def feature_module_forward(x, prep, *, tile_n=None):
    """Eval-mode FeatureModule forward. Returns (feat (N, low_dim), cls (N, class_num))."""
    n, input_dim = x.shape
    assert input_dim == prep["input_dim"], "input_dim mismatch with prepared params"
    low_dim, class_num = prep["low_dim"], prep["class_num"]

    w_fc, b, w_cls, b_cls = prep["w_fc"], prep["b"], prep["w_cls"], prep["b_cls"]
    compute_dtype = w_fc.dtype
    K = input_dim
    D = w_fc.shape[1]
    C = w_cls.shape[1]

    # x: only a dtype cast (no padding / re-materialization).  The partial tail row
    # block and the non-128 K extent are handled by block dims equal to full dims.
    x_c = x.astype(compute_dtype)

    if tile_n is None:
        tile_n = _choose_tile_n(n)
    tile_n = min(tile_n, n)
    num_tiles = _cdiv(n, tile_n)

    # --- VMEM budget: 2 buffers per operand (default pipelining) + f32 intermediates.
    item = jnp.dtype(compute_dtype).itemsize
    need = 2 * (tile_n * K * item                 # streamed x tile
                + K * D * item + D * 4            # resident W_fc + bias
                + D * C * item + C * 4            # resident W_cls + b_cls
                + tile_n * D * 4                  # feat output tile
                + tile_n * C * 4)                 # cls output tile
    need += tile_n * (D + C) * 4                  # in-kernel f32 h / cls values
    vmem_limit = int(min(_vmem_cap_bytes(), max(need + (4 << 20), 16 << 20)))

    flops = 2 * n * (K * D + D * C)
    bytes_accessed = int(x_c.size * item + w_fc.size * item + w_cls.size * item
                         + (D + C) * 4 + n * (D + C) * 4)
    cost = pl.CostEstimate(flops=flops, transcendentals=0,
                           bytes_accessed=bytes_accessed)

    feat_p, cls_p = pl.pallas_call(
        feature_kernel,
        out_shape=(
            jax.ShapeDtypeStruct((n, D), jnp.float32),
            jax.ShapeDtypeStruct((n, C), jnp.float32),
        ),
        grid_spec=pltpu.PrefetchScalarGridSpec(
            num_scalar_prefetch=0,
            grid=(num_tiles,),
            in_specs=[
                pl.BlockSpec((tile_n, K), lambda i: (i, 0)),   # x (streamed)
                pl.BlockSpec((K, D), lambda i: (0, 0)),        # W_fc (resident)
                pl.BlockSpec((1, D), lambda i: (0, 0)),        # bias (resident)
                pl.BlockSpec((D, C), lambda i: (0, 0)),        # W_cls (resident)
                pl.BlockSpec((1, C), lambda i: (0, 0)),        # b_cls (resident)
            ],
            out_specs=[
                pl.BlockSpec((tile_n, D), lambda i: (i, 0)),   # feat (lane-dense)
                pl.BlockSpec((tile_n, C), lambda i: (i, 0)),   # cls  (lane-dense)
            ],
        ),
        compiler_params=pltpu.CompilerParams(
            dimension_semantics=("parallel",),
            vmem_limit_bytes=vmem_limit,
        ),
        cost_estimate=cost,
    )(x_c, w_fc, b, w_cls, b_cls)

    feat = feat_p if D == low_dim else feat_p[:, :low_dim]
    cls_feat = cls_p if C == class_num else cls_p[:, :class_num]
    return feat, cls_feat


# ----------------------------------------------------------------------------------
# Reference + demo
# ----------------------------------------------------------------------------------
def make_params(key, input_dim, low_dim, class_num):
    k_fc_w, k_fc_b, k_cls = jax.random.split(key, 3)
    bound_fc = 1.0 / (input_dim ** 0.5)
    w_fc = jax.random.uniform(k_fc_w, (low_dim, input_dim),
                              minval=-bound_fc, maxval=bound_fc, dtype=jnp.float32)
    b_fc = jax.random.uniform(k_fc_b, (low_dim,),
                              minval=-bound_fc, maxval=bound_fc, dtype=jnp.float32)
    bound_cls = 1.0 / (low_dim ** 0.5)
    w_cls = jax.random.uniform(k_cls, (class_num, low_dim),
                               minval=-bound_cls, maxval=bound_cls, dtype=jnp.float32)
    # BatchNorm1d after weights_init_kaiming: gamma=1, beta=0; fresh running stats.
    bn_gamma = jnp.ones((low_dim,), jnp.float32)
    bn_beta = jnp.zeros((low_dim,), jnp.float32)
    bn_mean = jnp.zeros((low_dim,), jnp.float32)
    bn_var = jnp.ones((low_dim,), jnp.float32)
    return w_fc, b_fc, bn_gamma, bn_beta, bn_mean, bn_var, w_cls


def reference_forward(x, w_fc, b_fc, bn_gamma, bn_beta, bn_mean, bn_var, w_cls,
                      eps=1e-5):
    h = x @ w_fc.T + b_fc
    feat = (h - bn_mean) / jnp.sqrt(bn_var + eps) * bn_gamma + bn_beta
    cls_feat = feat @ w_cls.T
    return feat, cls_feat


if __name__ == "__main__":
    key = jax.random.PRNGKey(0)
    batch, input_dim, low_dim, class_num = 8, 32, 32, 16

    k_x, k_p = jax.random.split(key)
    x = jax.random.normal(k_x, (batch, input_dim), dtype=jnp.float32)
    raw = make_params(k_p, input_dim, low_dim, class_num)
    ref_feat, ref_cls = reference_forward(x, *raw)

    # f32 path: validates the kernel math exactly against the f32 reference.
    prep32 = prepare_params(*raw, compute_dtype=jnp.float32)
    fwd32 = jax.jit(lambda a: feature_module_forward(a, prep32))
    feat32, cls32 = jax.block_until_ready(fwd32(x))
    assert feat32.shape == (batch, low_dim)
    assert cls32.shape == (batch, class_num)
    assert jnp.allclose(feat32, ref_feat, atol=1e-5, rtol=1e-5)
    assert jnp.allclose(cls32, ref_cls, atol=1e-5, rtol=1e-5)

    # Default bf16 MXU path (production default): relaxed tolerance vs the f32 ref.
    prep16 = prepare_params(*raw)  # compute_dtype=bf16
    fwd16 = jax.jit(lambda a: feature_module_forward(a, prep16))
    feat16, cls16 = jax.block_until_ready(fwd16(x))
    assert feat16.shape == (batch, low_dim)
    assert cls16.shape == (batch, class_num)
    assert jnp.allclose(feat16, ref_feat, atol=3e-2, rtol=3e-2)
    assert jnp.allclose(cls16, ref_cls, atol=3e-2, rtol=3e-2)

    print("KERNEL_OK")
</pallas_src>

<mosaic_0001>
module attributes {stable_mosaic.version = 11 : i64} {
  func.func @feature_kernel(%arg0: i32, %arg1: memref<8x32xf32, #tpu.memory_space<vmem>>, %arg2: memref<32x128xf32, #tpu.memory_space<vmem>>, %arg3: memref<1x128xf32, #tpu.memory_space<vmem>>, %arg4: memref<128x128xf32, #tpu.memory_space<vmem>>, %arg5: memref<1x128xf32, #tpu.memory_space<vmem>>, %arg6: memref<8x128xf32, #tpu.memory_space<vmem>>, %arg7: memref<8x128xf32, #tpu.memory_space<vmem>>) attributes {dimension_semantics = [#tpu.dimension_semantics<parallel>], iteration_bounds = array<i64: 1>, scalar_prefetch = 0 : i64, scratch_operands = 0 : i64, tpu.core_type = #tpu.core_type<tc>, window_params = [{transform_indices = @transform_0, window_bounds = array<i64: 8, 32>}, {pipeline_mode = #tpu.pipeline_mode<synchronous>, transform_indices = @transform_1, window_bounds = array<i64: 32, 128>}, {pipeline_mode = #tpu.pipeline_mode<synchronous>, transform_indices = @transform_2, window_bounds = array<i64: 1, 128>}, {pipeline_mode = #tpu.pipeline_mode<synchronous>, transform_indices = @transform_3, window_bounds = array<i64: 128, 128>}, {pipeline_mode = #tpu.pipeline_mode<synchronous>, transform_indices = @transform_4, window_bounds = array<i64: 1, 128>}, {transform_indices = @transform_5, window_bounds = array<i64: 8, 128>}, {transform_indices = @transform_6, window_bounds = array<i64: 8, 128>}]} {
    %c0 = arith.constant 0 : index
    %c0_0 = arith.constant 0 : index
    %0 = vector.load %arg1[%c0, %c0_0] : memref<8x32xf32, #tpu.memory_space<vmem>>, vector<8x32xf32>
    %c0_1 = arith.constant 0 : index
    %c0_2 = arith.constant 0 : index
    %1 = vector.load %arg2[%c0_1, %c0_2] : memref<32x128xf32, #tpu.memory_space<vmem>>, vector<32x128xf32>
    %cst = arith.constant dense<0.000000e+00> : vector<8x128xf32>
    %2 = tpu.matmul %0, %1, %cst {dimension_numbers = #tpu.dot_dimension_numbers<[1], [0], [0], [1], [0, 0, 1, 1], [], []>} : vector<8x32xf32>, vector<32x128xf32>, vector<8x128xf32> -> vector<8x128xf32>
    %c0_3 = arith.constant 0 : index
    %c0_4 = arith.constant 0 : index
    %3 = vector.load %arg4[%c0_3, %c0_4] : memref<128x128xf32, #tpu.memory_space<vmem>>, vector<128x128xf32>
    %cst_5 = arith.constant dense<0.000000e+00> : vector<8x128xf32>
    %4 = tpu.matmul %2, %3, %cst_5 {dimension_numbers = #tpu.dot_dimension_numbers<[1], [0], [0], [1], [0, 0, 1, 1], [], []>} : vector<8x128xf32>, vector<128x128xf32>, vector<8x128xf32> -> vector<8x128xf32>
    %c0_6 = arith.constant 0 : index
    %c0_7 = arith.constant 0 : index
    %5 = vector.load %arg5[%c0_6, %c0_7] : memref<1x128xf32, #tpu.memory_space<vmem>>, vector<1x128xf32>
    %6 = vector.broadcast %5 : vector<1x128xf32> to vector<8x128xf32>
    %7 = arith.addf %4, %6 : vector<8x128xf32>
    %c0_8 = arith.constant 0 : index
    %c0_9 = arith.constant 0 : index
    %8 = vector.load %arg7[%c0_8, %c0_9] : memref<8x128xf32, #tpu.memory_space<vmem>>, vector<8x128xf32>
    tpu.vector_store %arg7[%c0_8, %c0_9], %7 {strides = array<i32>} : memref<8x128xf32, #tpu.memory_space<vmem>>, vector<8x128xf32>,
    %c0_10 = arith.constant 0 : index
    %c0_11 = arith.constant 0 : index
    %9 = vector.load %arg3[%c0_10, %c0_11] : memref<1x128xf32, #tpu.memory_space<vmem>>, vector<1x128xf32>
    %10 = vector.broadcast %9 : vector<1x128xf32> to vector<8x128xf32>
    %11 = arith.addf %2, %10 : vector<8x128xf32>
    %c0_12 = arith.constant 0 : index
    %c0_13 = arith.constant 0 : index
    %12 = vector.load %arg6[%c0_12, %c0_13] : memref<8x128xf32, #tpu.memory_space<vmem>>, vector<8x128xf32>
    tpu.vector_store %arg6[%c0_12, %c0_13], %11 {strides = array<i32>} : memref<8x128xf32, #tpu.memory_space<vmem>>, vector<8x128xf32>,
    return
  }
  func.func @transform_0(%arg0: i32) -> (i32, i32) {
    %c0_i32 = arith.constant 0 : i32
    %c0_i32_0 = arith.constant 0 : i32
    return %arg0, %c0_i32 : i32, i32
  }
  func.func @transform_1(%arg0: i32) -> (i32, i32) {
    %c0_i32 = arith.constant 0 : i32
    %c0_i32_0 = arith.constant 0 : i32
    %c0_i32_1 = arith.constant 0 : i32
    return %c0_i32, %c0_i32_0 : i32, i32
  }
  func.func @transform_2(%arg0: i32) -> (i32, i32) {
    %c0_i32 = arith.constant 0 : i32
    %c0_i32_0 = arith.constant 0 : i32
    %c0_i32_1 = arith.constant 0 : i32
    return %c0_i32, %c0_i32_0 : i32, i32
  }
  func.func @transform_3(%arg0: i32) -> (i32, i32) {
    %c0_i32 = arith.constant 0 : i32
    %c0_i32_0 = arith.constant 0 : i32
    %c0_i32_1 = arith.constant 0 : i32
    return %c0_i32, %c0_i32_0 : i32, i32
  }
  func.func @transform_4(%arg0: i32) -> (i32, i32) {
    %c0_i32 = arith.constant 0 : i32
    %c0_i32_0 = arith.constant 0 : i32
    %c0_i32_1 = arith.constant 0 : i32
    return %c0_i32, %c0_i32_0 : i32, i32
  }
  func.func @transform_5(%arg0: i32) -> (i32, i32) {
    %c0_i32 = arith.constant 0 : i32
    %c0_i32_0 = arith.constant 0 : i32
    return %arg0, %c0_i32 : i32, i32
  }
  func.func @transform_6(%arg0: i32) -> (i32, i32) {
    %c0_i32 = arith.constant 0 : i32
    %c0_i32_0 = arith.constant 0 : i32
    return %arg0, %c0_i32 : i32, i32
  }
}

</mosaic_0001>

<llo_original>
// kernel: _lambda_.1
$region0: #{_lambda_.1}
  #allocation0 [shape = 'u32[]', space=smem, size = 0x4, offset = 0x4, fixed_abs, tag = 'smem constant byte address 0x4 - core index']
  #allocation1 [shape = 'u32[144,128]{1,0:T(1,128)}', space=vmem, size = 0x12000, scoped, tag = 'internal scratch']
  %s0 = inlined_call_operand.hbm [shape: f32[8,32], index: 0, kind: input, shape index: {}]
  %s1 = inlined_call_operand.hbm [shape: f32[32,128], index: 1, kind: input, shape index: {}]
  %s2 = inlined_call_operand.vmem [shape: f32[1,128], index: 2, kind: input, shape index: {}]
  %s3 = inlined_call_operand.hbm [shape: f32[128,128], index: 3, kind: input, shape index: {}]
  %s4 = inlined_call_operand.vmem [shape: f32[1,128], index: 4, kind: input, shape index: {}]
  %s5 = inlined_call_operand.hbm [shape: f32[8,128], index: 5, kind: output, shape index: {0}]
  %s6 = inlined_call_operand.hbm [shape: f32[8,128], index: 6, kind: output, shape index: {1}]
  %7 = xla_tuple %s5, %s6
  %s8 = sld [smem:[#allocation0]]
  $region50: #{_lambda_.1} parent=0
    _
  %s10 = ssub.s32 1, %s8
  %s11 = scalar_select 0, %s10, %s8
  $region1: #{_lambda_.1} parent=0
    #allocation2 [shape = 'u8[4096]{0}', space=vmem, size = 0x1000, scoped, tag = 'input window, operand 0, single buffered']
    #allocation3 [shape = 's32[1]{0}', space=sflag, size = 0x4, scoped, tag = 'scoped memory for _lambda_.1']
    #allocation4 [shape = 's32[1]{0}', space=sflag, size = 0x4, scoped, tag = 'scoped memory for _lambda_.1']
    #allocation5 [shape = 'u8[16384]{0}', space=vmem, size = 0x4000, scoped, tag = 'input window, operand 1, single buffered']
    #allocation6 [shape = 's32[1]{0}', space=sflag, size = 0x4, scoped, tag = 'scoped memory for _lambda_.1']
    #allocation7 [shape = 'u8[65536]{0}', space=vmem, size = 0x10000, scoped, tag = 'input window, operand 3, single buffered']
    #allocation8 [shape = 'u8[4096]{0}', space=vmem, size = 0x1000, scoped, tag = 'output window, operand 0, single buffered']
    #allocation9 [shape = 'u8[4096]{0}', space=vmem, size = 0x1000, scoped, tag = 'output window, operand 1, single buffered']
    #allocation10 [shape = 's32[1]{0}', space=sflag, size = 0x4, scoped, tag = 'scoped memory for _lambda_.1']
    %12 = vsyncpa [#allocation3], 0
    %13 = vsyncpa [#allocation6], 0
    %14 = vsyncpa [#allocation4], 0
    %15 = vsyncpa [#allocation10], 0
    // Predicated region
    $region2: #{_lambda_.1} parent=1 // pred_check
      _
    $region3: #{_lambda_.1} parent=1 // pred_check_branch
      %17 = sbr.rel (0) target = $region5
    $region4: #{_lambda_.1} parent=1 // pred_region
      %s19 = ssub.s32 128, 128
      %20 = vsyncadd [#allocation3], %s19
      %s22 = sshll.u32 [#allocation2], 4
      %s23 = int_to_ptr.vmem [resolvable:$true] %s22
      %25 = dma.hbm_to_vmem [thread:$0]  %s0, 128, %s23, [#allocation3]
    $region5: #{_lambda_.1} parent=1 // pred_fallthru
      _
    // Predicated region
    $region6: #{_lambda_.1} parent=1 // pred_check
      _
    $region7: #{_lambda_.1} parent=1 // pred_check_branch
      %27 = sbr.rel (0) target = $region9
    $region8: #{_lambda_.1} parent=1 // pred_region
      %s29 = ssub.s32 512, 512
      %30 = vsyncadd [#allocation6], %s29
      %s31 = sshll.u32 [#allocation5], 4
      %s32 = int_to_ptr.vmem [resolvable:$true] %s31
      %37 = dma.hbm_to_vmem [thread:$0]  %s1, 512, %s32, [#allocation6], 128, 128, 8
    $region9: #{_lambda_.1} parent=1 // pred_fallthru
      _
    // Predicated region
    $region10: #{_lambda_.1} parent=1 // pred_check
      _
    $region11: #{_lambda_.1} parent=1 // pred_check_branch
      %39 = sbr.rel (0) target = $region13
    $region12: #{_lambda_.1} parent=1 // pred_region
      _
    $region13: #{_lambda_.1} parent=1 // pred_fallthru
      _
    // Predicated region
    $region14: #{_lambda_.1} parent=1 // pred_check
      _
    $region15: #{_lambda_.1} parent=1 // pred_check_branch
      %41 = sbr.rel (0) target = $region17
    $region16: #{_lambda_.1} parent=1 // pred_region
      %s43 = ssub.s32 2048, 2048
      %44 = vsyncadd [#allocation6], %s43
      %s45 = sshll.u32 [#allocation7], 4
      %s46 = int_to_ptr.vmem [resolvable:$true] %s45
      %51 = dma.hbm_to_vmem [thread:$0]  %s3, 2048, %s46, [#allocation6], 128, 128, 8
    $region17: #{_lambda_.1} parent=1 // pred_fallthru
      _
    // Predicated region
    $region18: #{_lambda_.1} parent=1 // pred_check
      _
    $region19: #{_lambda_.1} parent=1 // pred_check_branch
      %53 = sbr.rel (0) target = $region21
    $region20: #{_lambda_.1} parent=1 // pred_region
      _
    $region21: #{_lambda_.1} parent=1 // pred_fallthru
      _
    // Predicated region
    $region22: #{_lambda_.1} parent=1 // pred_check
      _
    $region23: #{_lambda_.1} parent=1 // pred_check_branch
      %55 = sbr.rel (0) target = $region25
    $region24: #{_lambda_.1} parent=1 // pred_region
      %56 = dma.done [#allocation3], 128
    $region25: #{_lambda_.1} parent=1 // pred_fallthru
      _
    // Predicated region
    $region26: #{_lambda_.1} parent=1 // pred_check
      _
    $region27: #{_lambda_.1} parent=1 // pred_check_branch
      %58 = sbr.rel (0) target = $region29
    $region28: #{_lambda_.1} parent=1 // pred_region
      %59 = dma.done [#allocation6], 512
    $region29: #{_lambda_.1} parent=1 // pred_fallthru
      _
    // Predicated region
    $region30: #{_lambda_.1} parent=1 // pred_check
      _
    $region31: #{_lambda_.1} parent=1 // pred_check_branch
      %61 = sbr.rel (0) target = $region33
    $region32: #{_lambda_.1} parent=1 // pred_region
      %62 = dma.done [#allocation6], 2048
    $region33: #{_lambda_.1} parent=1 // pred_fallthru
      _
    %v63 = vld [vmem:[#allocation2] sm:$0xff]
    %v64 = vld [vmem:[#allocation5] sm:$0xff]
    %v65 = vld [vmem:[#allocation5 + $0x8] sm:$0xff]
    %v66 = vld [vmem:[#allocation5 + $0x10] sm:$0xff]
    %v67 = vld [vmem:[#allocation5 + $0x18] sm:$0xff]
    %vm68 = vcmask 261120
    %v70 = vsel %vm68, %v63, 0
    %72 = vmatprep.subr.mxu0 0.0
    %73 = vmatpush1.msra.mxu0 0.0
    %74 = vmatprep.subr.mxu0 0.0
    %75 = vmatpush1.msra.mxu0 0.0
    %76 = vmatprep.subr.mxu0 0.0
    %77 = vmatpush1.msra.mxu0 0.0
    %78 = vmatprep.subr.mxu0 0.0
    %79 = vmatpush1.msra.mxu0 0.0
    %80 = vmatprep.subr.mxu0 0.0
    %81 = vmatpush1.msra.mxu0 0.0
    %82 = vmatprep.subr.mxu0 0.0
    %83 = vmatpush1.msra.mxu0 0.0
    %84 = vmatprep.subr.mxu0 0.0
    %85 = vmatpush1.msra.mxu0 0.0
    %86 = vmatprep.subr.mxu0 0.0
    %87 = vmatpush1.msra.mxu0 0.0
    %88 = vmatprep.subr.mxu0 0.0
    %89 = vmatpush1.msra.mxu0 0.0
    %90 = vmatprep.subr.mxu0 0.0
    %91 = vmatpush1.msra.mxu0 0.0
    %92 = vmatprep.subr.mxu0 0.0
    %93 = vmatpush1.msra.mxu0 0.0
    %94 = vmatprep.subr.mxu0 0.0
    %95 = vmatpush1.msra.mxu0 0.0
    %96 = vmatprep.subr.mxu0 0.0
    %97 = vmatpush1.msra.mxu0 %v67
    %98 = vmatprep.subr.mxu0 0.0
    %99 = vmatpush1.msra.mxu0 %v66
    %100 = vmatprep.subr.mxu0 0.0
    %101 = vmatpush1.msra.mxu0 %v65
    %102 = vmatprep.subr.mxu0 0.0
    %103 = vmatpush1.msra.mxu0 %v64
    %104 = vmatprep.subr.mxu0 0.0
    %105 = vmatpush2.msra.mxu0 0.0
    %106 = vmatprep.subr.mxu0 0.0
    %107 = vmatpush2.msra.mxu0 0.0
    %108 = vmatprep.subr.mxu0 0.0
    %109 = vmatpush2.msra.mxu0 0.0
    %110 = vmatprep.subr.mxu0 0.0
    %111 = vmatpush2.msra.mxu0 0.0
    %112 = vmatprep.subr.mxu0 0.0
    %113 = vmatpush2.msra.mxu0 0.0
    %114 = vmatprep.subr.mxu0 0.0
    %115 = vmatpush2.msra.mxu0 0.0
    %116 = vmatprep.subr.mxu0 0.0
    %117 = vmatpush2.msra.mxu0 0.0
    %118 = vmatprep.subr.mxu0 0.0
    %119 = vmatpush2.msra.mxu0 0.0
    %120 = vmatprep.subr.mxu0 0.0
    %121 = vmatpush2.msra.mxu0 0.0
    %122 = vmatprep.subr.mxu0 0.0
    %123 = vmatpush2.msra.mxu0 0.0
    %124 = vmatprep.subr.mxu0 0.0
    %125 = vmatpush2.msra.mxu0 0.0
    %126 = vmatprep.subr.mxu0 0.0
    %127 = vmatpush2.msra.mxu0 0.0
    %128 = vmatprep.subr.mxu0 0.0
    %129 = vmatpush2.msra.mxu0 0.0
    %130 = vmatprep.subr.mxu0 0.0
    %131 = vmatpush2.msra.mxu0 0.0
    %132 = vmatprep.subr.mxu0 0.0
    %133 = vmatpush2.msra.mxu0 0.0
    %134 = vmatprep.subr.mxu0 0.0
    %135 = vmatpush2.msra.mxu0 0.0
    %136 = vmatprep.mubr.f32.mxu0 0.0
    %137 = vmatmul.mubr.f32.gmra.mxu0 %v70
    %v138 = vpop.f32.mrf.mxu0
    %v139 = vadd.f32 0.0, %v138
    %v140 = vpop.f32.mrf.mxu0
    %141 = vdwg.mxu0
    %v142 = vld [vmem:[#allocation7] sm:$0xff]
    %v143 = vld [vmem:[#allocation7 + $0x8] sm:$0xff]
    %v144 = vld [vmem:[#allocation7 + $0x10] sm:$0xff]
    %v145 = vld [vmem:[#allocation7 + $0x18] sm:$0xff]
    %v146 = vld [vmem:[#allocation7 + $0x20] sm:$0xff]
    %v147 = vld [vmem:[#allocation7 + $0x28] sm:$0xff]
    %v148 = vld [vmem:[#allocation7 + $0x30] sm:$0xff]
    %v149 = vld [vmem:[#allocation7 + $0x38] sm:$0xff]
    %v150 = vld [vmem:[#allocation7 + $0x40] sm:$0xff]
    %v151 = vld [vmem:[#allocation7 + $0x48] sm:$0xff]
    %v152 = vld [vmem:[#allocation7 + $0x50] sm:$0xff]
    %v153 = vld [vmem:[#allocation7 + $0x58] sm:$0xff]
    %v154 = vld [vmem:[#allocation7 + $0x60] sm:$0xff]
    %v155 = vld [vmem:[#allocation7 + $0x68] sm:$0xff]
    %v156 = vld [vmem:[#allocation7 + $0x70] sm:$0xff]
    %v157 = vld [vmem:[#allocation7 + $0x78] sm:$0xff]
    %v158 = vld [vmem:[%s4] sm:$0x1]
    %v160 = vlaneseq
    %v161 = vshrl.u32 %v160, 7
    %v162 = vsub.s32 0, %v161
    %v163 = vrot.slane %v158, %v162
    %165 = vmatprep.subr.mxu0 0.0
    %166 = vmatpush1.msra.mxu0 %v157
    %167 = vmatprep.subr.mxu0 0.0
    %168 = vmatpush1.msra.mxu0 %v156
    %169 = vmatprep.subr.mxu0 0.0
    %170 = vmatpush1.msra.mxu0 %v155
    %171 = vmatprep.subr.mxu0 0.0
    %172 = vmatpush1.msra.mxu0 %v154
    %173 = vmatprep.subr.mxu0 0.0
    %174 = vmatpush1.msra.mxu0 %v153
    %175 = vmatprep.subr.mxu0 0.0
    %176 = vmatpush1.msra.mxu0 %v152
    %177 = vmatprep.subr.mxu0 0.0
    %178 = vmatpush1.msra.mxu0 %v151
    %179 = vmatprep.subr.mxu0 0.0
    %180 = vmatpush1.msra.mxu0 %v150
    %181 = vmatprep.subr.mxu0 0.0
    %182 = vmatpush1.msra.mxu0 %v149
    %183 = vmatprep.subr.mxu0 0.0
    %184 = vmatpush1.msra.mxu0 %v148
    %185 = vmatprep.subr.mxu0 0.0
    %186 = vmatpush1.msra.mxu0 %v147
    %187 = vmatprep.subr.mxu0 0.0
    %188 = vmatpush1.msra.mxu0 %v146
    %189 = vmatprep.subr.mxu0 0.0
    %190 = vmatpush1.msra.mxu0 %v145
    %191 = vmatprep.subr.mxu0 0.0
    %192 = vmatpush1.msra.mxu0 %v144
    %193 = vmatprep.subr.mxu0 0.0
    %194 = vmatpush1.msra.mxu0 %v143
    %195 = vmatprep.subr.mxu0 0.0
    %196 = vmatpush1.msra.mxu0 %v142
    %197 = vmatprep.subr.mxu0 0.0
    %198 = vmatpush2.msra.mxu0 0.0
    %199 = vmatprep.subr.mxu0 0.0
    %200 = vmatpush2.msra.mxu0 0.0
    %201 = vmatprep.subr.mxu0 0.0
    %202 = vmatpush2.msra.mxu0 0.0
    %203 = vmatprep.subr.mxu0 0.0
    %204 = vmatpush2.msra.mxu0 0.0
    %205 = vmatprep.subr.mxu0 0.0
    %206 = vmatpush2.msra.mxu0 0.0
    %207 = vmatprep.subr.mxu0 0.0
    %208 = vmatpush2.msra.mxu0 0.0
    %209 = vmatprep.subr.mxu0 0.0
    %210 = vmatpush2.msra.mxu0 0.0
    %211 = vmatprep.subr.mxu0 0.0
    %212 = vmatpush2.msra.mxu0 0.0
    %213 = vmatprep.subr.mxu0 0.0
    %214 = vmatpush2.msra.mxu0 0.0
    %215 = vmatprep.subr.mxu0 0.0
    %216 = vmatpush2.msra.mxu0 0.0
    %217 = vmatprep.subr.mxu0 0.0
    %218 = vmatpush2.msra.mxu0 0.0
    %219 = vmatprep.subr.mxu0 0.0
    %220 = vmatpush2.msra.mxu0 0.0
    %221 = vmatprep.subr.mxu0 0.0
    %222 = vmatpush2.msra.mxu0 0.0
    %223 = vmatprep.subr.mxu0 0.0
    %224 = vmatpush2.msra.mxu0 0.0
    %225 = vmatprep.subr.mxu0 0.0
    %226 = vmatpush2.msra.mxu0 0.0
    %227 = vmatprep.subr.mxu0 0.0
    %228 = vmatpush2.msra.mxu0 0.0
    %229 = vmatprep.mubr.f32.mxu0 0.0
    %230 = vmatmul.mubr.f32.gmra.mxu0 %v139
    %v231 = vpop.f32.mrf.mxu0
    %v232 = vadd.f32 %v163, %v231
    %v233 = vpop.f32.mrf.mxu0
    %234 = vdwg.mxu0
    %235 = vst [vmem:[#allocation9] sm:$0xff] %v232
    %v236 = vld [vmem:[%s2] sm:$0x1]
    %v238 = vlaneseq
    %v239 = vshrl.u32 %v238, 7
    %v240 = vsub.s32 0, %v239
    %v241 = vrot.slane %v236, %v240
    %v243 = vadd.f32 %v139, %v241
    %244 = vst [vmem:[#allocation8] sm:$0xff] %v243
    // Predicated region
    $region34: #{_lambda_.1} parent=1 // pred_check
      _
    $region35: #{_lambda_.1} parent=1 // pred_check_branch
      %246 = sbr.rel (0) target = $region37
    $region36: #{_lambda_.1} parent=1 // pred_region
      %s248 = ssub.s32 128, 128
      %249 = vsyncadd [#allocation4], %s248
      %s251 = sshll.u32 [#allocation8], 4
      %s252 = int_to_ptr.vmem [resolvable:$true] %s251
      %254 = dma.vmem_to_hbm [thread:$0]  %s252, 128, %s5, [#allocation4]
    $region37: #{_lambda_.1} parent=1 // pred_fallthru
      _
    // Predicated region
    $region38: #{_lambda_.1} parent=1 // pred_check
      _
    $region39: #{_lambda_.1} parent=1 // pred_check_branch
      %256 = sbr.rel (0) target = $region41
    $region40: #{_lambda_.1} parent=1 // pred_region
      %s258 = ssub.s32 128, 128
      %259 = vsyncadd [#allocation10], %s258
      %s261 = sshll.u32 [#allocation9], 4
      %s262 = int_to_ptr.vmem [resolvable:$true] %s261
      %264 = dma.vmem_to_hbm [thread:$0]  %s262, 128, %s6, [#allocation10]
    $region41: #{_lambda_.1} parent=1 // pred_fallthru
      _
    // Predicated region
    $region42: #{_lambda_.1} parent=1 // pred_check
      _
    $region43: #{_lambda_.1} parent=1 // pred_check_branch
      %266 = sbr.rel (0) target = $region45
    $region44: #{_lambda_.1} parent=1 // pred_region
      %267 = dma.done [#allocation4], 128
    $region45: #{_lambda_.1} parent=1 // pred_fallthru
      _
    // Predicated region
    $region46: #{_lambda_.1} parent=1 // pred_check
      _
    $region47: #{_lambda_.1} parent=1 // pred_check_branch
      %269 = sbr.rel (0) target = $region49
    $region48: #{_lambda_.1} parent=1 // pred_region
      %270 = dma.done [#allocation10], 128
    $region49: #{_lambda_.1} parent=1 // pred_fallthru
      _
    %271 = vsyncpa [#allocation3], 1
    %272 = vsyncpa [#allocation6], 1
    %273 = vsyncpa [#allocation4], 1
    %274 = vsyncpa [#allocation10], 1

</llo_original>
